<compile_context>
chip_gen: v7x
topology: tpu7x:2x2x1
jax: 0.10.0
libtpu: 0.0.40
codegen_flags: <defaults>
</compile_context>

<pallas_src>
import math

import jax
import jax.numpy as jnp
from jax.experimental import pallas as pl
from jax.experimental.pallas import tpu as pltpu


def _round_up(x, m):
    return -(-x // m) * m


def _vmem_limit_bytes():
    """Scoped-VMEM limit per chip generation."""
    try:
        cap = int(pltpu.get_tpu_info().vmem_capacity_bytes)
    except Exception:
        cap = 128 * 1024 * 1024
    if cap <= 64 * 1024 * 1024:
        # v7x-class: 64 MiB physical per TensorCore -> keep total well under it.
        return 44 * 1024 * 1024
    # v5e / v6e: 128 MiB physical -> a 64 MiB scoped limit unlocks large tiles.
    return 64 * 1024 * 1024


def _pick_spatial_tile(S):
    """Largest 128-multiple divisor of S (long contiguous HBM runs), else full S."""
    for c in (8192, 4096, 2048, 1024, 512, 256, 128):
        if c <= S and S % c == 0:
            return c
    # Full-extent last dim is always a legal block shape (covers S < 128 and
    # non-128-divisible S, e.g. 7x7 / 14x14 global pools).
    # TODO(synk): for huge non-divisible S a masked tail tile would bound the
    # block size; not needed for realistic global-pool shapes.
    return S


def _pick_row_tile(N, tile_s, lane_width, itemsize, vmem_limit):
    """Row tile sized from the real (padded) VMEM footprint; pads N if needed."""
    padded_s = _round_up(tile_s, 128)
    padded_lw = _round_up(lane_width, 128)
    # Per row: 2 double-buffered input rows + 2 f32 (sum/max) accumulator rows.
    bytes_per_row = 2 * padded_s * itemsize + 2 * padded_lw * 4
    usable = vmem_limit - (8 << 20)           # headroom: outputs + internal scratch
    max_rows = max(8, (usable // bytes_per_row) // 8 * 8)

    # Prefer the largest multiple-of-8 divisor of N under the budget (no padding).
    tile_n = 0
    d = 8
    limit = min(N, max_rows)
    while d <= limit:
        if N % d == 0:
            tile_n = d
        d += 8

    pad_rows = 0
    if tile_n == 0:
        # No suitable divisor: split N into the fewest budget-sized tiles and pad
        # a handful of rows (their bogus outputs are sliced away by the wrapper).
        n_tiles = max(1, math.ceil(N / max_rows))
        tile_n = min(max_rows, _round_up(math.ceil(N / n_tiles), 8))
        pad_rows = _round_up(N, tile_n) - N

    # v7x megacore: keep >= 2 steps on the "parallel" row axis so both
    # TensorCores get work (no effect on single-TC v5e/v6e).
    if (N + pad_rows) // tile_n < 2 and tile_n % 16 == 0:
        tile_n //= 2

    return tile_n, pad_rows


def _make_kernel(inv_s, tile_s, lane_width):
    chunks = tile_s // lane_width
    assert chunks * lane_width == tile_s

    def kernel(x_ref, avg_ref, max_ref, sum_sc, max_sc):
        s = pl.program_id(1)

        @pl.when(s == 0)
        def _():
            sum_sc[...] = jnp.zeros_like(sum_sc)
            max_sc[...] = jnp.full_like(max_sc, -jnp.inf)

        # Hot loop: lane-parallel VPU add/max into (tile_n, lane_width) f32
        # scratch, via static lane-aligned column slices.  No per-step XLU reduce.
        for c in range(chunks):
            xc = x_ref[:, c * lane_width:(c + 1) * lane_width].astype(jnp.float32)
            sum_sc[...] += xc
            max_sc[...] = jnp.maximum(max_sc[...], xc)

        # Single cross-lane reduce, once per row tile, then write the outputs.
        @pl.when(s == pl.num_programs(1) - 1)
        def _():
            avg_ref[...] = (jnp.sum(sum_sc[...], axis=-1, keepdims=True)
                            * inv_s).astype(avg_ref.dtype)
            max_ref[...] = jnp.max(max_sc[...], axis=-1,
                                   keepdims=True).astype(max_ref.dtype)

    return kernel


def global_cat_avg_max_pool(x, kernel_size):
    """x: [B, C, H, W]. Returns squeeze(cat([avgpool(x), maxpool(x)], dim=1))."""
    B, C, H, W = x.shape
    if isinstance(kernel_size, int):
        kernel_size = (kernel_size, kernel_size)
    # TODO(synk): only the *global* pooling case (kernel_size == (H, W)) is
    # implemented; windowed pooling with spatial outputs > 1x1 is not.
    assert tuple(kernel_size) == (H, W), "only global pooling supported"

    N, S = B * C, H * W
    itemsize = jnp.dtype(x.dtype).itemsize

    tile_s = _pick_spatial_tile(S)
    lane_width = 128 if tile_s % 128 == 0 else tile_s
    vmem_limit = _vmem_limit_bytes()
    tile_n, pad_rows = _pick_row_tile(N, tile_s, lane_width, itemsize, vmem_limit)

    x2 = x.reshape(N, S)                       # free row-major reshape
    if pad_rows:
        # Padded rows reduce independently; their outputs are discarded below.
        x2 = jnp.pad(x2, ((0, pad_rows), (0, 0)))
    Np = N + pad_rows

    grid = (Np // tile_n, S // tile_s)

    avg, mx = pl.pallas_call(
        _make_kernel(1.0 / float(S), tile_s, lane_width),
        out_shape=(jax.ShapeDtypeStruct((Np, 1), x.dtype),
                   jax.ShapeDtypeStruct((Np, 1), x.dtype)),
        grid_spec=pltpu.PrefetchScalarGridSpec(
            num_scalar_prefetch=0,
            grid=grid,
            in_specs=[pl.BlockSpec((tile_n, tile_s), lambda i, s: (i, s))],
            out_specs=(pl.BlockSpec((tile_n, 1), lambda i, s: (i, 0)),
                       pl.BlockSpec((tile_n, 1), lambda i, s: (i, 0))),
            scratch_shapes=[pltpu.VMEM((tile_n, lane_width), jnp.float32),
                            pltpu.VMEM((tile_n, lane_width), jnp.float32)]),
        compiler_params=pltpu.CompilerParams(
            dimension_semantics=("parallel", "arbitrary"),
            vmem_limit_bytes=vmem_limit),
        cost_estimate=pl.CostEstimate(
            flops=2 * N * S,
            transcendentals=0,
            bytes_accessed=Np * S * itemsize + 2 * Np * itemsize),
    )(x2)

    avg = avg[:N].reshape(B, C)
    mx = mx[:N].reshape(B, C)
    out = jnp.concatenate([avg, mx], axis=1)
    # Replicate torch.squeeze on the [B, 2C, 1, 1] concat result exactly.
    return jnp.squeeze(out.reshape(B, 2 * C, 1, 1))


if __name__ == "__main__":
    key = jax.random.PRNGKey(0)
    B, C, H, W = 2, 4, 16, 16
    x = jax.random.normal(key, (B, C, H, W), jnp.float32)

    out = global_cat_avg_max_pool(x, kernel_size=(H, W))
    out = jax.block_until_ready(out)

    # Pure-JAX reference.
    ref_avg = jnp.mean(x, axis=(2, 3))
    ref_max = jnp.max(x, axis=(2, 3))
    ref = jnp.squeeze(
        jnp.concatenate([ref_avg, ref_max], axis=1).reshape(B, 2 * C, 1, 1))

    assert out.shape == (B, 2 * C), out.shape
    assert jnp.allclose(out, ref, atol=1e-5, rtol=1e-5), "mismatch vs reference"

    print("KERNEL_OK")
</pallas_src>

<mosaic_0001>
module attributes {stable_mosaic.version = 11 : i64} {
  func.func @kernel(%arg0: i32, %arg1: i32, %arg2: memref<8x256xf32, #tpu.memory_space<vmem>>, %arg3: memref<8x1xf32, #tpu.memory_space<vmem>>, %arg4: memref<8x1xf32, #tpu.memory_space<vmem>>, %arg5: memref<8x128xf32, #tpu.memory_space<vmem>>, %arg6: memref<8x128xf32, #tpu.memory_space<vmem>>) attributes {dimension_semantics = [#tpu.dimension_semantics<parallel>, #tpu.dimension_semantics<arbitrary>], iteration_bounds = array<i64: 1, 1>, scalar_prefetch = 0 : i64, scratch_operands = 2 : i64, tpu.core_type = #tpu.core_type<tc>, window_params = [{transform_indices = @transform_0, window_bounds = array<i64: 8, 256>}, {transform_indices = @transform_1, window_bounds = array<i64: 8, 1>}, {transform_indices = @transform_2, window_bounds = array<i64: 8, 1>}]} {
    %c0_i32 = arith.constant 0 : i32
    %0 = arith.cmpi eq, %arg1, %c0_i32 : i32
    %1 = arith.extui %0 : i1 to i32
    %c0_i32_0 = arith.constant 0 : i32
    %2 = arith.cmpi ne, %1, %c0_i32_0 : i32
    scf.if %2 {
      %cst = arith.constant 0.000000e+00 : f32
      %20 = vector.broadcast %cst : f32 to vector<8x128xf32>
      %c0_21 = arith.constant 0 : index
      %c0_22 = arith.constant 0 : index
      %21 = vector.load %arg5[%c0_21, %c0_22] : memref<8x128xf32, #tpu.memory_space<vmem>>, vector<8x128xf32>
      tpu.vector_store %arg5[%c0_21, %c0_22], %20 {strides = array<i32>} : memref<8x128xf32, #tpu.memory_space<vmem>>, vector<8x128xf32>,
      %cst_23 = arith.constant 0xFF800000 : f32
      %22 = vector.broadcast %cst_23 : f32 to vector<8x128xf32>
      %c0_24 = arith.constant 0 : index
      %c0_25 = arith.constant 0 : index
      %23 = vector.load %arg6[%c0_24, %c0_25] : memref<8x128xf32, #tpu.memory_space<vmem>>, vector<8x128xf32>
      tpu.vector_store %arg6[%c0_24, %c0_25], %22 {strides = array<i32>} : memref<8x128xf32, #tpu.memory_space<vmem>>, vector<8x128xf32>,
    } else {
    }
    %c0 = arith.constant 0 : index
    %c0_1 = arith.constant 0 : index
    %3 = vector.load %arg2[%c0, %c0_1] : memref<8x256xf32, #tpu.memory_space<vmem>>, vector<8x128xf32>
    %c0_2 = arith.constant 0 : index
    %c0_3 = arith.constant 0 : index
    %4 = vector.load %arg5[%c0_2, %c0_3] : memref<8x128xf32, #tpu.memory_space<vmem>>, vector<8x128xf32>
    %5 = arith.addf %4, %3 : vector<8x128xf32>
    %c0_4 = arith.constant 0 : index
    %c0_5 = arith.constant 0 : index
    %6 = vector.load %arg5[%c0_4, %c0_5] : memref<8x128xf32, #tpu.memory_space<vmem>>, vector<8x128xf32>
    tpu.vector_store %arg5[%c0_4, %c0_5], %5 {strides = array<i32>} : memref<8x128xf32, #tpu.memory_space<vmem>>, vector<8x128xf32>,
    %c0_6 = arith.constant 0 : index
    %c0_7 = arith.constant 0 : index
    %7 = vector.load %arg6[%c0_6, %c0_7] : memref<8x128xf32, #tpu.memory_space<vmem>>, vector<8x128xf32>
    %8 = arith.maximumf %7, %3 : vector<8x128xf32>
    %c0_8 = arith.constant 0 : index
    %c0_9 = arith.constant 0 : index
    %9 = vector.load %arg6[%c0_8, %c0_9] : memref<8x128xf32, #tpu.memory_space<vmem>>, vector<8x128xf32>
    tpu.vector_store %arg6[%c0_8, %c0_9], %8 {strides = array<i32>} : memref<8x128xf32, #tpu.memory_space<vmem>>, vector<8x128xf32>,
    %c0_10 = arith.constant 0 : index
    %c128 = arith.constant 128 : index
    %10 = vector.load %arg2[%c0_10, %c128] : memref<8x256xf32, #tpu.memory_space<vmem>>, vector<8x128xf32>
    %c0_11 = arith.constant 0 : index
    %c0_12 = arith.constant 0 : index
    %11 = vector.load %arg5[%c0_11, %c0_12] : memref<8x128xf32, #tpu.memory_space<vmem>>, vector<8x128xf32>
    %12 = arith.addf %11, %10 : vector<8x128xf32>
    %c0_13 = arith.constant 0 : index
    %c0_14 = arith.constant 0 : index
    %13 = vector.load %arg5[%c0_13, %c0_14] : memref<8x128xf32, #tpu.memory_space<vmem>>, vector<8x128xf32>
    tpu.vector_store %arg5[%c0_13, %c0_14], %12 {strides = array<i32>} : memref<8x128xf32, #tpu.memory_space<vmem>>, vector<8x128xf32>,
    %c0_15 = arith.constant 0 : index
    %c0_16 = arith.constant 0 : index
    %14 = vector.load %arg6[%c0_15, %c0_16] : memref<8x128xf32, #tpu.memory_space<vmem>>, vector<8x128xf32>
    %15 = arith.maximumf %14, %10 : vector<8x128xf32>
    %c0_17 = arith.constant 0 : index
    %c0_18 = arith.constant 0 : index
    %16 = vector.load %arg6[%c0_17, %c0_18] : memref<8x128xf32, #tpu.memory_space<vmem>>, vector<8x128xf32>
    tpu.vector_store %arg6[%c0_17, %c0_18], %15 {strides = array<i32>} : memref<8x128xf32, #tpu.memory_space<vmem>>, vector<8x128xf32>,
    %c0_i32_19 = arith.constant 0 : i32
    %17 = arith.cmpi eq, %arg1, %c0_i32_19 : i32
    %18 = arith.extui %17 : i1 to i32
    %c0_i32_20 = arith.constant 0 : i32
    %19 = arith.cmpi ne, %18, %c0_i32_20 : i32
    scf.if %19 {
      %c0_21 = arith.constant 0 : index
      %c0_22 = arith.constant 0 : index
      %20 = vector.load %arg5[%c0_21, %c0_22] : memref<8x128xf32, #tpu.memory_space<vmem>>, vector<8x128xf32>
      %cst = arith.constant dense<0.000000e+00> : vector<8xf32>
      %21 = vector.multi_reduction <add>, %20, %cst [1] : vector<8x128xf32> to vector<8xf32>
      %22 = vector.shape_cast %21 : vector<8xf32> to vector<8x1xf32>
      %cst_23 = arith.constant 3.906250e-03 : f32
      %23 = vector.broadcast %cst_23 : f32 to vector<8x1xf32>
      %24 = arith.mulf %22, %23 : vector<8x1xf32>
      %c0_24 = arith.constant 0 : index
      %c0_25 = arith.constant 0 : index
      %25 = vector.load %arg3[%c0_24, %c0_25] : memref<8x1xf32, #tpu.memory_space<vmem>>, vector<8x1xf32>
      tpu.vector_store %arg3[%c0_24, %c0_25], %24 {strides = array<i32>} : memref<8x1xf32, #tpu.memory_space<vmem>>, vector<8x1xf32>,
      %c0_26 = arith.constant 0 : index
      %c0_27 = arith.constant 0 : index
      %26 = vector.load %arg6[%c0_26, %c0_27] : memref<8x128xf32, #tpu.memory_space<vmem>>, vector<8x128xf32>
      %cst_28 = arith.constant dense<0xFF800000> : vector<8xf32>
      %27 = vector.multi_reduction <maximumf>, %26, %cst_28 [1] : vector<8x128xf32> to vector<8xf32>
      %28 = vector.shape_cast %27 : vector<8xf32> to vector<8x1xf32>
      %c0_29 = arith.constant 0 : index
      %c0_30 = arith.constant 0 : index
      %29 = vector.load %arg4[%c0_29, %c0_30] : memref<8x1xf32, #tpu.memory_space<vmem>>, vector<8x1xf32>
      tpu.vector_store %arg4[%c0_29, %c0_30], %28 {strides = array<i32>} : memref<8x1xf32, #tpu.memory_space<vmem>>, vector<8x1xf32>,
    } else {
    }
    return
  }
  func.func @transform_0(%arg0: i32, %arg1: i32) -> (i32, i32) {
    %c0_i32 = arith.constant 0 : i32
    return %arg0, %arg1 : i32, i32
  }
  func.func @transform_1(%arg0: i32, %arg1: i32) -> (i32, i32) {
    %c0_i32 = arith.constant 0 : i32
    %c0_i32_0 = arith.constant 0 : i32
    return %arg0, %c0_i32 : i32, i32
  }
  func.func @transform_2(%arg0: i32, %arg1: i32) -> (i32, i32) {
    %c0_i32 = arith.constant 0 : i32
    %c0_i32_0 = arith.constant 0 : i32
    return %arg0, %c0_i32 : i32, i32
  }
}

</mosaic_0001>

<llo_original>
// kernel: tpu_custom_call.1
$region0: #{tpu_custom_call.1}
  #allocation0 [shape = 'u32[]', space=smem, size = 0x4, offset = 0x4, fixed_abs, tag = 'smem constant byte address 0x4 - core index']
  #allocation1 [shape = 'u32[144,128]{1,0:T(1,128)}', space=vmem, size = 0x12000, scoped, tag = 'internal scratch']
  #allocation2 [shape = 'f32[8,128]{1,0:T(8,128)}', space=vmem, size = 0x1000, scoped, tag = 'scratch operand']
  #allocation3 [shape = 'f32[8,128]{1,0:T(8,128)}', space=vmem, size = 0x1000, scoped, tag = 'scratch operand']
  %s0 = inlined_call_operand.hbm [shape: f32[8,256], index: 0, kind: input, shape index: {}]
  %s1 = inlined_call_operand.hbm [shape: f32[8,1], index: 1, kind: output, shape index: {0}]
  %s2 = inlined_call_operand.hbm [shape: f32[8,1], index: 2, kind: output, shape index: {1}]
  %3 = xla_tuple %s1, %s2
  %s4 = sld [smem:[#allocation0]]
  $region34: #{tpu_custom_call.1} parent=0
    _
  %s6 = ssub.s32 1, %s4
  %s7 = scalar_select 0, %s6, %s4
  $region1: #{tpu_custom_call.1} parent=0
    #allocation4 [shape = 'u8[8192]{0}', space=vmem, size = 0x2000, scoped, tag = 'input window, operand 0, single buffered']
    #allocation5 [shape = 's32[1]{0}', space=sflag, size = 0x4, scoped, tag = 'scoped memory for tpu_custom_call.1']
    #allocation6 [shape = 's32[1]{0}', space=sflag, size = 0x4, scoped, tag = 'scoped memory for tpu_custom_call.1']
    #allocation7 [shape = 'u8[4096]{0}', space=vmem, size = 0x1000, scoped, tag = 'output window, operand 0, single buffered']
    #allocation8 [shape = 'u8[4096]{0}', space=vmem, size = 0x1000, scoped, tag = 'output window, operand 1, single buffered']
    #allocation9 [shape = 's32[1]{0}', space=sflag, size = 0x4, scoped, tag = 'scoped memory for tpu_custom_call.1']
    %8 = vsyncpa [#allocation5], 0
    %9 = vsyncpa [#allocation6], 0
    %10 = vsyncpa [#allocation9], 0
    // Predicated region
    $region2: #{tpu_custom_call.1} parent=1 // pred_check
      _
    $region3: #{tpu_custom_call.1} parent=1 // pred_check_branch
      %12 = sbr.rel (0) target = $region5
    $region4: #{tpu_custom_call.1} parent=1 // pred_region
      %s14 = ssub.s32 256, 256
      %15 = vsyncadd [#allocation5], %s14
      %s17 = sshll.u32 [#allocation4], 4
      %s18 = int_to_ptr.vmem [resolvable:$true] %s17
      %20 = dma.hbm_to_vmem [thread:$0]  %s0, 256, %s18, [#allocation5]
    $region5: #{tpu_custom_call.1} parent=1 // pred_fallthru
      _
    // Predicated region
    $region6: #{tpu_custom_call.1} parent=1 // pred_check
      _
    $region7: #{tpu_custom_call.1} parent=1 // pred_check_branch
      %22 = sbr.rel (0) target = $region9
    $region8: #{tpu_custom_call.1} parent=1 // pred_region
      %23 = dma.done [#allocation5], 256
    $region9: #{tpu_custom_call.1} parent=1 // pred_fallthru
      _
    %p24 = scmp.eq.s32.totalorder 0, 0
    // Predicated region
    $region10: #{tpu_custom_call.1} parent=1 // pred_check
      %p25 = pneg %p24
    $region11: #{tpu_custom_call.1} parent=1 // pred_check_branch
      %27 = sbr.rel (%p25) target = $region13
    $region12: #{tpu_custom_call.1} parent=1 // pred_region
      %28 = vst [vmem:[#allocation2] sm:$0xff] 0.0
      %29 = vst [vmem:[#allocation3] sm:$0xff] -inf
    $region13: #{tpu_custom_call.1} parent=1 // pred_fallthru
      _
    %v30 = vld [vmem:[#allocation4] sm:$0xff]
    %v31 = vld [vmem:[#allocation2] sm:$0xff]
    %v32 = vadd.f32 %v31, %v30
    %33 = vst [vmem:[#allocation2] sm:$0xff] %v32
    %v34 = vld [vmem:[#allocation3] sm:$0xff]
    %v35 = vmax.f32 %v34, %v30
    %36 = vst [vmem:[#allocation3] sm:$0xff] %v35
    %v37 = vld [vmem:[#allocation4 + $0x8] sm:$0xff]
    %v38 = vld [vmem:[#allocation2] sm:$0xff]
    %v39 = vadd.f32 %v38, %v37
    %40 = vst [vmem:[#allocation2] sm:$0xff] %v39
    %v41 = vld [vmem:[#allocation3] sm:$0xff]
    %v42 = vmax.f32 %v41, %v37
    %43 = vst [vmem:[#allocation3] sm:$0xff] %v42
    // Predicated region
    $region14: #{tpu_custom_call.1} parent=1 // pred_check
      %p44 = pneg %p24
    $region15: #{tpu_custom_call.1} parent=1 // pred_check_branch
      %46 = sbr.rel (%p44) target = $region17
    $region16: #{tpu_custom_call.1} parent=1 // pred_region
      %v47 = vld [vmem:[#allocation2] sm:$0xff]
      %48 = vadd.xlane.f32.xlu0 %v47
      %v49 = vpop.xlane.xlu0 %48
      %v50 = vmul.f32 %v49, 0.00390625
      %vm51 = vcmask 7168
      %52 = vst.msk [vmem:[#allocation7] sm:$0xff] %vm51, %v50
      %v53 = vld [vmem:[#allocation3] sm:$0xff]
      %54 = vmax.xlane.f32.xlu0 %v53
      %v55 = vpop.xlane.xlu0 %54
      %56 = vst.msk [vmem:[#allocation8] sm:$0xff] %vm51, %v55
    $region17: #{tpu_custom_call.1} parent=1 // pred_fallthru
      _
    // Predicated region
    $region18: #{tpu_custom_call.1} parent=1 // pred_check
      _
    $region19: #{tpu_custom_call.1} parent=1 // pred_check_branch
      %58 = sbr.rel (0) target = $region21
    $region20: #{tpu_custom_call.1} parent=1 // pred_region
      %s60 = ssub.s32 128, 128
      %61 = vsyncadd [#allocation6], %s60
      %s63 = sshll.u32 [#allocation7], 4
      %s64 = int_to_ptr.vmem [resolvable:$true] %s63
      %66 = dma.vmem_to_hbm [thread:$0]  %s64, 128, %s1, [#allocation6]
    $region21: #{tpu_custom_call.1} parent=1 // pred_fallthru
      _
    // Predicated region
    $region22: #{tpu_custom_call.1} parent=1 // pred_check
      _
    $region23: #{tpu_custom_call.1} parent=1 // pred_check_branch
      %68 = sbr.rel (0) target = $region25
    $region24: #{tpu_custom_call.1} parent=1 // pred_region
      %s70 = ssub.s32 128, 128
      %71 = vsyncadd [#allocation9], %s70
      %s73 = sshll.u32 [#allocation8], 4
      %s74 = int_to_ptr.vmem [resolvable:$true] %s73
      %76 = dma.vmem_to_hbm [thread:$0]  %s74, 128, %s2, [#allocation9]
    $region25: #{tpu_custom_call.1} parent=1 // pred_fallthru
      _
    // Predicated region
    $region26: #{tpu_custom_call.1} parent=1 // pred_check
      _
    $region27: #{tpu_custom_call.1} parent=1 // pred_check_branch
      %78 = sbr.rel (0) target = $region29
    $region28: #{tpu_custom_call.1} parent=1 // pred_region
      %79 = dma.done [#allocation6], 128
    $region29: #{tpu_custom_call.1} parent=1 // pred_fallthru
      _
    // Predicated region
    $region30: #{tpu_custom_call.1} parent=1 // pred_check
      _
    $region31: #{tpu_custom_call.1} parent=1 // pred_check_branch
      %81 = sbr.rel (0) target = $region33
    $region32: #{tpu_custom_call.1} parent=1 // pred_region
      %82 = dma.done [#allocation9], 128
    $region33: #{tpu_custom_call.1} parent=1 // pred_fallthru
      _
    %83 = vsyncpa [#allocation5], 1
    %84 = vsyncpa [#allocation6], 1
    %85 = vsyncpa [#allocation9], 1

</llo_original>
